<compile_context>
chip_gen: v7x
topology: tpu7x:2x2x1
jax: 0.10.0
libtpu: 0.0.40
codegen_flags: <defaults>
</compile_context>

<pallas_src>
import jax
import jax.numpy as jnp
import numpy as np
from jax.experimental import pallas as pl
from jax.experimental.pallas import tpu as pltpu


# ----------------------------- small helpers --------------------------------
def _matT(a, b):
    # a: [m, k], b: [n, k] -> [m, n]   (a @ b.T, PyTorch F.linear convention)
    return jax.lax.dot_general(a, b, (((1,), (1,)), ((), ())),
                               preferred_element_type=jnp.float32)


def _tmat(a, b):
    # a: [k, m], b: [k, n] -> [m, n]   (a.T @ b, for weight gradients)
    return jax.lax.dot_general(a, b, (((0,), (0,)), ((), ())),
                               preferred_element_type=jnp.float32)


def _pick_tile(dim, target, align):
    """Largest tile <= target that is either the full dim or an align-multiple divisor."""
    if dim <= target:
        return dim
    t = (target // align) * align
    while t >= align:
        if dim % t == 0:
            return t
        t -= align
    return dim


def _chunk_size(s, target):
    t = max(1, min(target, s))
    while s % t != 0:
        t -= 1
    return t


# ---------------- kernel 1: tiled linear  (x @ W.T + b) ----------------------
def _linear_kernel(x_ref, w_ref, b_ref, o_ref, acc_ref):
    @pl.when(pl.program_id(2) == 0)
    def _():
        acc_ref[...] = jnp.zeros_like(acc_ref)

    acc_ref[...] += _matT(x_ref[...], w_ref[...])

    @pl.when(pl.program_id(2) == pl.num_programs(2) - 1)
    def _():
        o_ref[...] = (acc_ref[...] + b_ref[...]).astype(o_ref.dtype)


def linear_pallas(x, w, b, *, tm=256, tn=256, tk=256):
    # x: [M, K], w: [N, K], b: [1, N] -> [M, N]
    m, k = x.shape
    n = w.shape[0]
    tm = _pick_tile(m, tm, 8)      # sublane-aligned
    tn = _pick_tile(n, tn, 128)    # lane-dense output columns
    tk = _pick_tile(k, tk, 128)
    grid = (m // tm, n // tn, k // tk)
    return pl.pallas_call(
        _linear_kernel,
        grid=grid,
        in_specs=[pl.BlockSpec((tm, tk), lambda i, j, kk: (i, kk)),
                  pl.BlockSpec((tn, tk), lambda i, j, kk: (j, kk)),
                  pl.BlockSpec((1, tn), lambda i, j, kk: (0, j))],
        out_specs=pl.BlockSpec((tm, tn), lambda i, j, kk: (i, j)),
        out_shape=jax.ShapeDtypeStruct((m, n), jnp.float32),
        scratch_shapes=[pltpu.VMEM((tm, tn), jnp.float32)],
        compiler_params=pltpu.CompilerParams(
            dimension_semantics=("parallel", "parallel", "arbitrary")),
    )(x, w, b)


# -------- kernel 2: merged depthwise conv + L2 norm + gate reduction ---------
def _prep_kernel(x_ref, cw_ref, cb_ref, kn_ref, v_ref, qn_ref, g_ref, conv_ref):
    s, bsz, _ = x_ref.shape
    ks = cw_ref.shape[0]
    pad = (ks - 1) // 2
    kd = kn_ref.shape[2]
    vd = v_ref.shape[2]
    qd = qn_ref.shape[2]
    dcat = conv_ref.shape[2]

    x = x_ref[...]                                   # [S, B, Kd+Vd+Qd+3]
    kvq = x[:, :, 0:dcat]                            # [S, B, Dcat]

    # depthwise 'same' cross-correlation along S (edges handled in-kernel).
    conv_ref[...] = kvq * cw_ref[pad:pad + 1, :] + cb_ref[...]
    for j in range(ks):
        off = j - pad
        if off == 0:
            continue
        wj = cw_ref[j:j + 1, :]                      # [1, Dcat]
        if off < 0:
            conv_ref[-off:s, :, :] = conv_ref[-off:s, :, :] + kvq[0:s + off] * wj
        else:
            conv_ref[0:s - off, :, :] = conv_ref[0:s - off, :, :] + kvq[off:s] * wj

    conv = conv_ref[...]
    k = conv[:, :, 0:kd]
    v = conv[:, :, kd:kd + vd]
    q = conv[:, :, kd + vd:kd + vd + qd]

    # F.normalize(p=2, dim=-1, eps=1e-12)  ==  x * rsqrt(max(sum(x^2), eps^2))
    k_inv = jax.lax.rsqrt(jnp.maximum(jnp.sum(k * k, axis=-1, keepdims=True), 1e-24))
    q_inv = jax.lax.rsqrt(jnp.maximum(jnp.sum(q * q, axis=-1, keepdims=True), 1e-24))
    kn_ref[...] = k * k_inv
    v_ref[...] = v
    qn_ref[...] = q * q_inv

    # per-token learned gates: batch-mean of sigmoid / sigmoid / softplus.
    gp = x[:, :, dcat:dcat + 3]                      # [S, B, 3]
    lane = jax.lax.broadcasted_iota(jnp.int32, gp.shape, 2)
    gact = jnp.where(lane < 2, jax.nn.sigmoid(gp), jax.nn.softplus(gp))
    g_ref[...] = jnp.mean(gact, axis=1)              # [S, 3]  (alpha, eta, theta)


def conv_norm_gates(proj_sbd, conv_w, conv_b, kd, vd, qd):
    s, bsz, dp = proj_sbd.shape
    dcat = kd + vd + qd
    return pl.pallas_call(
        _prep_kernel,
        grid=(1,),
        in_specs=[pl.BlockSpec((s, bsz, dp), lambda i: (0, 0, 0)),
                  pl.BlockSpec(conv_w.shape, lambda i: (0, 0)),
                  pl.BlockSpec(conv_b.shape, lambda i: (0, 0))],
        out_specs=(pl.BlockSpec((s, bsz, kd), lambda i: (0, 0, 0)),
                   pl.BlockSpec((s, bsz, vd), lambda i: (0, 0, 0)),
                   pl.BlockSpec((s, bsz, qd), lambda i: (0, 0, 0)),
                   pl.BlockSpec((s, 3), lambda i: (0, 0))),
        out_shape=(jax.ShapeDtypeStruct((s, bsz, kd), jnp.float32),
                   jax.ShapeDtypeStruct((s, bsz, vd), jnp.float32),
                   jax.ShapeDtypeStruct((s, bsz, qd), jnp.float32),
                   jax.ShapeDtypeStruct((s, 3), jnp.float32)),
        scratch_shapes=[pltpu.VMEM((s, bsz, dcat), jnp.float32)],
    )(proj_sbd, conv_w, conv_b)


# --------------- kernel 3: chunked LMM recurrence (serial core) --------------
def _lmm_chunk_kernel(gates_ref,                       # SMEM [S, 3] (prefetch)
                      kn_ref, v_ref, qn_ref,           # [Ts, B, *] chunk blocks
                      w1_0_ref, b1_0_ref, w2_0_ref, b2_0_ref,
                      retr_ref,                        # [Ts, B, Vd]
                      mw1_ref, mb1_ref, mw2_ref, mb2_ref,
                      sw1_ref, sb1_ref, sw2_ref, sb2_ref):
    c = pl.program_id(0)
    ts = retr_ref.shape[0]
    bsz = retr_ref.shape[1]
    vdim = retr_ref.shape[2]
    inv_bn = 2.0 / float(bsz * vdim)

    @pl.when(c == 0)
    def _init():
        mw1_ref[...] = w1_0_ref[...]
        mb1_ref[...] = b1_0_ref[...]
        mw2_ref[...] = w2_0_ref[...]
        mb2_ref[...] = b2_0_ref[...]
        sw1_ref[...] = jnp.zeros_like(sw1_ref)
        sb1_ref[...] = jnp.zeros_like(sb1_ref)
        sw2_ref[...] = jnp.zeros_like(sw2_ref)
        sb2_ref[...] = jnp.zeros_like(sb2_ref)

    def step(i, carry):
        w1, b1, w2, b2, s_w1, s_b1, s_w2, s_b2 = carry
        t = c * ts + i
        alpha = gates_ref[t, 0]
        eta = gates_ref[t, 1]
        theta = gates_ref[t, 2]

        kt = kn_ref[i]                               # [B, Kd] (pre-normalized)
        vt = v_ref[i]                                # [B, Vd]
        qt = qn_ref[i]                               # [B, Qd] (pre-normalized)

        # momentary surprise: grad of mean-MSE(MLP(kt; M_{t-1}), vt) wrt M.
        h_pre = _matT(kt, w1) + b1                   # [B, H]
        sig = jax.nn.sigmoid(h_pre)
        h = h_pre * sig                              # SiLU
        pred = _matT(h, w2) + b2                     # [B, Vd]
        dpred = inv_bn * (pred - vt)
        g_w2 = _tmat(dpred, h)                       # [Vd, H]
        g_b2 = jnp.sum(dpred, axis=0, keepdims=True)
        dh = jnp.dot(dpred, w2, preferred_element_type=jnp.float32)  # [B, H]
        dh_pre = dh * (sig * (1.0 + h_pre * (1.0 - sig)))            # SiLU'
        g_w1 = _tmat(dh_pre, kt)                     # [H, Kd]
        g_b1 = jnp.sum(dh_pre, axis=0, keepdims=True)

        # S_t = eta*S_{t-1} - theta*grad ; M_t = (1-alpha)*M_{t-1} + S_t
        s_w1 = eta * s_w1 - theta * g_w1
        s_b1 = eta * s_b1 - theta * g_b1
        s_w2 = eta * s_w2 - theta * g_w2
        s_b2 = eta * s_b2 - theta * g_b2
        keep = 1.0 - alpha
        w1 = keep * w1 + s_w1
        b1 = keep * b1 + s_b1
        w2 = keep * w2 + s_w2
        b2 = keep * b2 + s_b2

        # retrieval with updated memory M_t (vocab head is a separate kernel).
        h2p = _matT(qt, w1) + b1
        h2 = h2p * jax.nn.sigmoid(h2p)
        retr_ref[i] = _matT(h2, w2) + b2             # [B, Vd]
        return (w1, b1, w2, b2, s_w1, s_b1, s_w2, s_b2)

    carry0 = (mw1_ref[...], mb1_ref[...], mw2_ref[...], mb2_ref[...],
              sw1_ref[...], sb1_ref[...], sw2_ref[...], sb2_ref[...])
    w1, b1, w2, b2, s_w1, s_b1, s_w2, s_b2 = jax.lax.fori_loop(
        0, ts, step, carry0, unroll=True)

    mw1_ref[...] = w1
    mb1_ref[...] = b1
    mw2_ref[...] = w2
    mb2_ref[...] = b2
    sw1_ref[...] = s_w1
    sb1_ref[...] = s_b1
    sw2_ref[...] = s_w2
    sb2_ref[...] = s_b2


def lmm_recurrence(kn, v, qn, gates, w1_0, b1_0, w2_0, b2_0, *, chunk=8):
    s, bsz, kd = kn.shape
    vd = v.shape[2]
    qd = qn.shape[2]
    ts = _chunk_size(s, chunk)

    seq = lambda d: pl.BlockSpec((ts, bsz, d), lambda c, g: (c, 0, 0))
    const = lambda arr: pl.BlockSpec(arr.shape, lambda c, g: (0, 0))
    sds = lambda arr: jax.ShapeDtypeStruct(arr.shape, jnp.float32)

    out_shape = (jax.ShapeDtypeStruct((s, bsz, vd), jnp.float32),
                 sds(w1_0), sds(b1_0), sds(w2_0), sds(b2_0),
                 sds(w1_0), sds(b1_0), sds(w2_0), sds(b2_0))
    out_specs = (pl.BlockSpec((ts, bsz, vd), lambda c, g: (c, 0, 0)),
                 const(w1_0), const(b1_0), const(w2_0), const(b2_0),
                 const(w1_0), const(b1_0), const(w2_0), const(b2_0))

    grid_spec = pltpu.PrefetchScalarGridSpec(
        num_scalar_prefetch=1,                 # gates [S,3] -> SMEM
        grid=(s // ts,),
        in_specs=[seq(kd), seq(vd), seq(qd),
                  const(w1_0), const(b1_0), const(w2_0), const(b2_0)],
        out_specs=out_specs)

    return pl.pallas_call(
        _lmm_chunk_kernel,
        grid_spec=grid_spec,
        out_shape=out_shape,
        compiler_params=pltpu.CompilerParams(
            dimension_semantics=("arbitrary",)),   # strictly sequential in t
    )(gates, kn, v, qn, w1_0, b1_0, w2_0, b2_0)


# ------------------------------- full model ----------------------------------
def lm_model_forward(input_ids, p, *, chunk=8):
    bsz, s = input_ids.shape
    e = p['embedding'].shape[1]
    kd, vd, qd = p['Wk'].shape[0], p['Wv'].shape[0], p['Wq'].shape[0]

    emb = p['embedding'][input_ids]                          # [B, S, E]
    x = emb + p['pos_encoder'][:, :s, :]                     # [B, S, E]
    x_sbe = jnp.transpose(x, (1, 0, 2)).astype(jnp.float32)  # [S, B, E]
    x_flat = x_sbe.reshape(s * bsz, e)

    # Fused QKV + gate projection: one tiled MXU matmul over x.
    w_cat = jnp.concatenate([p['Wk'], p['Wv'], p['Wq'], p['gate_w']], axis=0)
    b_cat = jnp.concatenate([p['bk'], p['bv'], p['bq'], p['gate_b']], axis=1)
    proj = linear_pallas(x_flat, w_cat, b_cat)               # [S*B, Kd+Vd+Qd+3]
    proj_sbd = proj.reshape(s, bsz, -1)

    # Merged depthwise conv + L2 normalization + gate reduction (batched).
    cw_cat = jnp.concatenate([p['conv_k_w'], p['conv_v_w'], p['conv_q_w']], axis=1)
    cb_cat = jnp.concatenate([p['conv_k_b'], p['conv_v_b'], p['conv_q_b']], axis=1)
    kn, vv, qn, gates = conv_norm_gates(proj_sbd, cw_cat, cb_cat, kd, vd, qd)

    # Serial Titans recurrence (chunked, state resident in VMEM).
    outs = lmm_recurrence(kn, vv, qn, gates,
                          p['mem_w1'], p['mem_b1'], p['mem_w2'], p['mem_b2'],
                          chunk=chunk)
    retr = outs[0]                                           # [S, B, Vd]
    final_state = (list(outs[1:5]), list(outs[5:9]))         # (M_N, S_N)

    # Vocab head hoisted out of the recurrence: batched tiled matmul.
    logits_flat = linear_pallas(retr.reshape(s * bsz, vd), p['out_w'], p['out_b'])
    logits = jnp.transpose(logits_flat.reshape(s, bsz, -1), (1, 0, 2))  # [B,S,V]
    return logits, final_state


# ------------------------ deterministic parameter init -----------------------
def init_params(key, vocab, e, kd, vd, qd, hdim, max_seq_len, ks=3):
    keys = jax.random.split(key, 24)
    it = iter(keys)
    nrm = lambda shape, sc: (sc * jax.random.normal(next(it), shape)).astype(jnp.float32)
    return dict(
        embedding=nrm((vocab, e), 0.1),
        pos_encoder=nrm((1, max_seq_len, e), 0.02),
        Wk=nrm((kd, e), 0.2), bk=nrm((1, kd), 0.02),
        Wv=nrm((vd, e), 0.2), bv=nrm((1, vd), 0.02),
        Wq=nrm((qd, e), 0.2), bq=nrm((1, qd), 0.02),
        conv_k_w=nrm((ks, kd), 0.3), conv_k_b=nrm((1, kd), 0.02),
        conv_v_w=nrm((ks, vd), 0.3), conv_v_b=nrm((1, vd), 0.02),
        conv_q_w=nrm((ks, qd), 0.3), conv_q_b=nrm((1, qd), 0.02),
        mem_w1=nrm((hdim, kd), 0.3), mem_b1=nrm((1, hdim), 0.02),
        mem_w2=nrm((vd, hdim), 0.3), mem_b2=nrm((1, vd), 0.02),
        gate_w=nrm((3, e), 0.2), gate_b=nrm((1, 3), 0.02),
        out_w=nrm((vocab, qd), 0.2), out_b=nrm((1, vocab), 0.02),
    )


# -------------------------- pure-JAX reference (check) ------------------------
def reference_forward(input_ids, p):
    bsz, s = input_ids.shape
    emb = p['embedding'][input_ids]
    x = jnp.transpose(emb + p['pos_encoder'][:, :s, :], (1, 0, 2))  # [S,B,E]

    def lin(z, w, b):
        return jnp.matmul(z, w.T) + b

    def dwconv(z, w, b):
        pad = (w.shape[0] - 1) // 2
        zp = jnp.pad(z, ((pad, pad), (0, 0), (0, 0)))
        out = sum(zp[j:j + s] * w[j] for j in range(w.shape[0]))
        return out + b

    keys_ = dwconv(lin(x, p['Wk'], p['bk']), p['conv_k_w'], p['conv_k_b'])
    vals_ = dwconv(lin(x, p['Wv'], p['bv']), p['conv_v_w'], p['conv_v_b'])
    qrys_ = dwconv(lin(x, p['Wq'], p['bq']), p['conv_q_w'], p['conv_q_b'])

    w1, b1, w2, b2 = p['mem_w1'], p['mem_b1'], p['mem_w2'], p['mem_b2']
    sw1, sb1 = jnp.zeros_like(w1), jnp.zeros_like(b1)
    sw2, sb2 = jnp.zeros_like(w2), jnp.zeros_like(b2)
    silu = lambda z: z * jax.nn.sigmoid(z)
    logits = []
    for t in range(s):
        xt, kt, vt, qt = x[t], keys_[t], vals_[t], qrys_[t]
        kt = kt / jnp.maximum(jnp.linalg.norm(kt, axis=-1, keepdims=True), 1e-12)
        qt = qt / jnp.maximum(jnp.linalg.norm(qt, axis=-1, keepdims=True), 1e-12)
        gpre = xt @ p['gate_w'].T + p['gate_b']
        alpha = jnp.mean(jax.nn.sigmoid(gpre[:, 0]))
        eta = jnp.mean(jax.nn.sigmoid(gpre[:, 1]))
        theta = jnp.mean(jax.nn.softplus(gpre[:, 2]))
        h_pre = kt @ w1.T + b1
        sg = jax.nn.sigmoid(h_pre)
        h = h_pre * sg
        pred = h @ w2.T + b2
        dpred = 2.0 * (pred - vt) / (pred.shape[0] * pred.shape[1])
        g_w2 = dpred.T @ h
        g_b2 = jnp.sum(dpred, axis=0, keepdims=True)
        dh = dpred @ w2
        dh_pre = dh * (sg * (1.0 + h_pre * (1.0 - sg)))
        g_w1 = dh_pre.T @ kt
        g_b1 = jnp.sum(dh_pre, axis=0, keepdims=True)
        sw1, sb1 = eta * sw1 - theta * g_w1, eta * sb1 - theta * g_b1
        sw2, sb2 = eta * sw2 - theta * g_w2, eta * sb2 - theta * g_b2
        w1, b1 = (1 - alpha) * w1 + sw1, (1 - alpha) * b1 + sb1
        w2, b2 = (1 - alpha) * w2 + sw2, (1 - alpha) * b2 + sb2
        retr = silu(qt @ w1.T + b1) @ w2.T + b2
        logits.append(retr @ p['out_w'].T + p['out_b'])
    return jnp.transpose(jnp.stack(logits, axis=0), (1, 0, 2))


# ----------------------------------- main ------------------------------------
if __name__ == "__main__":
    VOCAB, EMBED = 64, 32
    KD = VD = QD = 16
    HID = 32
    B, S, MAXLEN = 2, 8, 16

    key = jax.random.PRNGKey(0)
    pkey, dkey = jax.random.split(key)
    params = init_params(pkey, VOCAB, EMBED, KD, VD, QD, HID, MAXLEN)
    input_ids = jax.random.randint(dkey, (B, S), 0, VOCAB, dtype=jnp.int32)

    # chunk=4 -> two recurrence grid steps, exercising the resident-state carry.
    logits, (m_final, s_final) = lm_model_forward(input_ids, params, chunk=4)
    logits = jax.block_until_ready(logits)

    ref = reference_forward(input_ids, params)
    assert logits.shape == (B, S, VOCAB)
    max_err = float(np.max(np.abs(np.asarray(logits) - np.asarray(ref))))
    assert np.isfinite(np.asarray(logits)).all()
    assert max_err < 2e-2, max_err
    print("KERNEL_OK")
</pallas_src>

<mosaic_0001>
module attributes {stable_mosaic.version = 11 : i64} {
  func.func @_linear_kernel(%arg0: i32, %arg1: i32, %arg2: i32, %arg3: memref<16x32xf32, #tpu.memory_space<vmem>>, %arg4: memref<51x32xf32, #tpu.memory_space<vmem>>, %arg5: memref<1x51xf32, #tpu.memory_space<vmem>>, %arg6: memref<16x51xf32, #tpu.memory_space<vmem>>, %arg7: memref<16x51xf32, #tpu.memory_space<vmem>>) attributes {dimension_semantics = [#tpu.dimension_semantics<parallel>, #tpu.dimension_semantics<parallel>, #tpu.dimension_semantics<arbitrary>], iteration_bounds = array<i64: 1, 1, 1>, scalar_prefetch = 0 : i64, scratch_operands = 1 : i64, tpu.core_type = #tpu.core_type<tc>, window_params = [{transform_indices = @transform_0, window_bounds = array<i64: 16, 32>}, {transform_indices = @transform_1, window_bounds = array<i64: 51, 32>}, {transform_indices = @transform_2, window_bounds = array<i64: 1, 51>}, {transform_indices = @transform_3, window_bounds = array<i64: 16, 51>}]} {
    %c0_i32 = arith.constant 0 : i32
    %0 = arith.cmpi eq, %arg2, %c0_i32 : i32
    %1 = arith.extui %0 : i1 to i32
    %c0_i32_0 = arith.constant 0 : i32
    %2 = arith.cmpi ne, %1, %c0_i32_0 : i32
    scf.if %2 {
      %cst_10 = arith.constant 0.000000e+00 : f32
      %12 = vector.broadcast %cst_10 : f32 to vector<16x51xf32>
      %c0_11 = arith.constant 0 : index
      %c0_12 = arith.constant 0 : index
      %13 = vector.load %arg7[%c0_11, %c0_12] : memref<16x51xf32, #tpu.memory_space<vmem>>, vector<16x51xf32>
      tpu.vector_store %arg7[%c0_11, %c0_12], %12 {strides = array<i32>} : memref<16x51xf32, #tpu.memory_space<vmem>>, vector<16x51xf32>,
    } else {
    }
    %c0 = arith.constant 0 : index
    %c0_1 = arith.constant 0 : index
    %3 = vector.load %arg7[%c0, %c0_1] : memref<16x51xf32, #tpu.memory_space<vmem>>, vector<16x51xf32>
    %c0_2 = arith.constant 0 : index
    %c0_3 = arith.constant 0 : index
    %4 = vector.load %arg3[%c0_2, %c0_3] : memref<16x32xf32, #tpu.memory_space<vmem>>, vector<16x32xf32>
    %c0_4 = arith.constant 0 : index
    %c0_5 = arith.constant 0 : index
    %5 = vector.load %arg4[%c0_4, %c0_5] : memref<51x32xf32, #tpu.memory_space<vmem>>, vector<51x32xf32>
    %cst = arith.constant dense<0.000000e+00> : vector<16x51xf32>
    %6 = tpu.matmul %4, %5, %cst {dimension_numbers = #tpu.dot_dimension_numbers<[1], [1], [0], [0], [0, 0, 1, 0], [], []>} : vector<16x32xf32>, vector<51x32xf32>, vector<16x51xf32> -> vector<16x51xf32>
    %7 = arith.addf %3, %6 : vector<16x51xf32>
    %c0_6 = arith.constant 0 : index
    %c0_7 = arith.constant 0 : index
    %8 = vector.load %arg7[%c0_6, %c0_7] : memref<16x51xf32, #tpu.memory_space<vmem>>, vector<16x51xf32>
    tpu.vector_store %arg7[%c0_6, %c0_7], %7 {strides = array<i32>} : memref<16x51xf32, #tpu.memory_space<vmem>>, vector<16x51xf32>,
    %c0_i32_8 = arith.constant 0 : i32
    %9 = arith.cmpi eq, %arg2, %c0_i32_8 : i32
    %10 = arith.extui %9 : i1 to i32
    %c0_i32_9 = arith.constant 0 : i32
    %11 = arith.cmpi ne, %10, %c0_i32_9 : i32
    scf.if %11 {
      %c0_10 = arith.constant 0 : index
      %c0_11 = arith.constant 0 : index
      %12 = vector.load %arg7[%c0_10, %c0_11] : memref<16x51xf32, #tpu.memory_space<vmem>>, vector<16x51xf32>
      %c0_12 = arith.constant 0 : index
      %c0_13 = arith.constant 0 : index
      %13 = vector.load %arg5[%c0_12, %c0_13] : memref<1x51xf32, #tpu.memory_space<vmem>>, vector<1x51xf32>
      %14 = vector.broadcast %13 : vector<1x51xf32> to vector<16x51xf32>
      %15 = arith.addf %12, %14 : vector<16x51xf32>
      %c0_14 = arith.constant 0 : index
      %c0_15 = arith.constant 0 : index
      %16 = vector.load %arg6[%c0_14, %c0_15] : memref<16x51xf32, #tpu.memory_space<vmem>>, vector<16x51xf32>
      tpu.vector_store %arg6[%c0_14, %c0_15], %15 {strides = array<i32>} : memref<16x51xf32, #tpu.memory_space<vmem>>, vector<16x51xf32>,
    } else {
    }
    return
  }
  func.func @transform_0(%arg0: i32, %arg1: i32, %arg2: i32) -> (i32, i32) {
    %c0_i32 = arith.constant 0 : i32
    return %arg0, %arg2 : i32, i32
  }
  func.func @transform_1(%arg0: i32, %arg1: i32, %arg2: i32) -> (i32, i32) {
    %c0_i32 = arith.constant 0 : i32
    return %arg1, %arg2 : i32, i32
  }
  func.func @transform_2(%arg0: i32, %arg1: i32, %arg2: i32) -> (i32, i32) {
    %c0_i32 = arith.constant 0 : i32
    %c0_i32_0 = arith.constant 0 : i32
    return %c0_i32, %arg1 : i32, i32
  }
  func.func @transform_3(%arg0: i32, %arg1: i32, %arg2: i32) -> (i32, i32) {
    %c0_i32 = arith.constant 0 : i32
    return %arg0, %arg1 : i32, i32
  }
}

</mosaic_0001>

<llo_original>
// kernel: tpu_custom_call.1
$region0: #{tpu_custom_call.1}
  #allocation0 [shape = 'u32[]', space=smem, size = 0x4, offset = 0x4, fixed_abs, tag = 'smem constant byte address 0x4 - core index']
  #allocation1 [shape = 'u32[144,128]{1,0:T(1,128)}', space=vmem, size = 0x12000, scoped, tag = 'internal scratch']
  #allocation2 [shape = 'f32[16,51]{1,0:T(8,128)}', space=vmem, size = 0x2000, scoped, tag = 'scratch operand']
  %s0 = inlined_call_operand.vmem [shape: f32[16,32], index: 0, kind: input, shape index: {}]
  %s1 = inlined_call_operand.vmem [shape: f32[51,32], index: 1, kind: input, shape index: {}]
  %s2 = inlined_call_operand.vmem [shape: f32[1,51], index: 2, kind: input, shape index: {}]
  %s3 = inlined_call_operand.hbm [shape: f32[16,51], index: 3, kind: output, shape index: {}]
  %s4 = sld [smem:[#allocation0]]
  $region30: #{tpu_custom_call.1} parent=0
    _
  %s6 = ssub.s32 1, %s4
  %s7 = scalar_select 0, %s6, %s4
  $region1: #{tpu_custom_call.1} parent=0
    #allocation3 [shape = 'u8[8192]{0}', space=vmem, size = 0x2000, scoped, tag = 'output window, operand 0, single buffered']
    #allocation4 [shape = 's32[1]{0}', space=sflag, size = 0x4, scoped, tag = 'scoped memory for tpu_custom_call.1']
    %8 = vsyncpa [#allocation4], 0
    // Predicated region
    $region2: #{tpu_custom_call.1} parent=1 // pred_check
      _
    $region3: #{tpu_custom_call.1} parent=1 // pred_check_branch
      %10 = sbr.rel (0) target = $region5
    $region4: #{tpu_custom_call.1} parent=1 // pred_region
      _
    $region5: #{tpu_custom_call.1} parent=1 // pred_fallthru
      _
    // Predicated region
    $region6: #{tpu_custom_call.1} parent=1 // pred_check
      _
    $region7: #{tpu_custom_call.1} parent=1 // pred_check_branch
      %12 = sbr.rel (0) target = $region9
    $region8: #{tpu_custom_call.1} parent=1 // pred_region
      _
    $region9: #{tpu_custom_call.1} parent=1 // pred_fallthru
      _
    // Predicated region
    $region10: #{tpu_custom_call.1} parent=1 // pred_check
      _
    $region11: #{tpu_custom_call.1} parent=1 // pred_check_branch
      %14 = sbr.rel (0) target = $region13
    $region12: #{tpu_custom_call.1} parent=1 // pred_region
      _
    $region13: #{tpu_custom_call.1} parent=1 // pred_fallthru
      _
    %p15 = scmp.eq.s32.totalorder 0, 0
    // Predicated region
    $region14: #{tpu_custom_call.1} parent=1 // pred_check
      %p16 = pneg %p15
    $region15: #{tpu_custom_call.1} parent=1 // pred_check_branch
      %18 = sbr.rel (%p16) target = $region17
    $region16: #{tpu_custom_call.1} parent=1 // pred_region
      %vm19 = vcmask 416768
      %20 = vst.msk [vmem:[#allocation2] sm:$0xff] %vm19, 0.0
      %21 = vst.msk [vmem:[#allocation2 + $0x8] sm:$0xff] %vm19, 0.0
    $region17: #{tpu_custom_call.1} parent=1 // pred_fallthru
      _
    %v22 = vld [vmem:[#allocation2] sm:$0xff]
    %v23 = vld [vmem:[#allocation2 + $0x8] sm:$0xff]
    %v24 = vld [vmem:[%s0] sm:$0xff]
    %v25 = vld [vmem:[%s0 + $0x8] sm:$0xff]
    %v26 = vld [vmem:[%s1] sm:$0xff]
    %v27 = vld [vmem:[%s1 + $0x8] sm:$0xff]
    %v28 = vld [vmem:[%s1 + $0x10] sm:$0xff]
    %v29 = vld [vmem:[%s1 + $0x18] sm:$0xff]
    %v30 = vld [vmem:[%s1 + $0x20] sm:$0xff]
    %v31 = vld [vmem:[%s1 + $0x28] sm:$0xff]
    %v32 = vld [vmem:[%s1 + $0x30] sm:$0x7]
    %vm33 = vcmask 261120
    %v35 = vsel %vm33, %v24, 0
    %v38 = vsel %vm33, %v25, 0
    %v41 = vsel %vm33, %v26, 0
    %v44 = vsel %vm33, %v27, 0
    %v47 = vsel %vm33, %v28, 0
    %v50 = vsel %vm33, %v29, 0
    %v53 = vsel %vm33, %v30, 0
    %v56 = vsel %vm33, %v31, 0
    %v59 = vsel %vm33, %v32, 0
    %61 = vmatprep.subr.mxu0 0.0
    %62 = vmatpush1.xpose.msra.mxu0 %v41
    %63 = vmatprep.subr.mxu0 0.0
    %64 = vmatpush1.xpose.msra.mxu0 %v44
    %65 = vmatprep.subr.mxu0 0.0
    %66 = vmatpush1.xpose.msra.mxu0 %v47
    %67 = vmatprep.subr.mxu0 0.0
    %68 = vmatpush1.xpose.msra.mxu0 %v50
    %69 = vmatprep.subr.mxu0 0.0
    %70 = vmatpush1.xpose.msra.mxu0 %v53
    %71 = vmatprep.subr.mxu0 0.0
    %72 = vmatpush1.xpose.msra.mxu0 %v56
    %73 = vmatprep.subr.mxu0 0.0
    %74 = vmatpush1.xpose.msra.mxu0 %v59
    %75 = vmatprep.subr.mxu0 0.0
    %76 = vmatpush1.xpose.msra.mxu0 0.0
    %77 = vmatprep.subr.mxu0 0.0
    %78 = vmatpush1.xpose.msra.mxu0 0.0
    %79 = vmatprep.subr.mxu0 0.0
    %80 = vmatpush1.xpose.msra.mxu0 0.0
    %81 = vmatprep.subr.mxu0 0.0
    %82 = vmatpush1.xpose.msra.mxu0 0.0
    %83 = vmatprep.subr.mxu0 0.0
    %84 = vmatpush1.xpose.msra.mxu0 0.0
    %85 = vmatprep.subr.mxu0 0.0
    %86 = vmatpush1.xpose.msra.mxu0 0.0
    %87 = vmatprep.subr.mxu0 0.0
    %88 = vmatpush1.xpose.msra.mxu0 0.0
    %89 = vmatprep.subr.mxu0 0.0
    %90 = vmatpush1.xpose.msra.mxu0 0.0
    %91 = vmatprep.subr.mxu0 0.0
    %92 = vmatpush1.xpose.msra.mxu0 0.0
    %93 = vmatprep.subr.mxu0 0.0
    %94 = vmatpush1.xpose.msra.mxu0 0.0
    %95 = vmatprep.subr.mxu0 0.0
    %96 = vmatpush1.xpose.msra.mxu0 0.0
    %97 = vmatprep.subr.mxu0 0.0
    %98 = vmatpush1.xpose.msra.mxu0 0.0
    %99 = vmatprep.subr.mxu0 0.0
    %100 = vmatpush1.xpose.msra.mxu0 0.0
    %101 = vmatprep.subr.mxu0 0.0
    %102 = vmatpush1.xpose.msra.mxu0 0.0
    %103 = vmatprep.subr.mxu0 0.0
    %104 = vmatpush1.xpose.msra.mxu0 0.0
    %105 = vmatprep.subr.mxu0 0.0
    %106 = vmatpush1.xpose.msra.mxu0 0.0
    %107 = vmatprep.subr.mxu0 0.0
    %108 = vmatpush1.xpose.msra.mxu0 0.0
    %109 = vmatprep.subr.mxu0 0.0
    %110 = vmatpush1.xpose.msra.mxu0 0.0
    %111 = vmatprep.subr.mxu0 0.0
    %112 = vmatpush1.xpose.msra.mxu0 0.0
    %113 = vmatprep.subr.mxu0 0.0
    %114 = vmatpush1.xpose.msra.mxu0 0.0
    %115 = vmatprep.subr.mxu0 0.0
    %116 = vmatpush1.xpose.msra.mxu0 0.0
    %117 = vmatprep.subr.mxu0 0.0
    %118 = vmatpush1.xpose.msra.mxu0 0.0
    %119 = vmatprep.subr.mxu0 0.0
    %120 = vmatpush1.xpose.msra.mxu0 0.0
    %121 = vmatprep.subr.mxu0 0.0
    %122 = vmatpush1.xpose.msra.mxu0 0.0
    %123 = vmatprep.subr.mxu0 0.0
    %124 = vmatpush1.xpose.msra.mxu0 0.0
    %125 = vmatprep.mubr.f32.mxu0 0.0
    %126 = vmatmul.mubr.f32.gmra.mrb[0].mxu0 %v35
    %v127 = vpop.f32.mrb[0].mxu0
    %v128 = vadd.f32 0.0, %v127
    %v129 = vpop.f32.mrb[0].mxu0
    %130 = vmatprep.mubr.f32.mxu0 0.0
    %131 = vmatmul.mubr.f32.gmra.mrb[0].mxu0 %v38
    %v132 = vpop.f32.mrb[0].mxu0
    %v133 = vadd.f32 0.0, %v132
    %v134 = vpop.f32.mrb[0].mxu0
    %135 = vdwg.mxu0
    %v136 = vadd.f32 %v22, %v128
    %v137 = vadd.f32 %v23, %v133
    %vm138 = vcmask 416768
    %139 = vst.msk [vmem:[#allocation2] sm:$0xff] %vm138, %v136
    %140 = vst.msk [vmem:[#allocation2 + $0x8] sm:$0xff] %vm138, %v137
    // Predicated region
    $region18: #{tpu_custom_call.1} parent=1 // pred_check
      %p141 = pneg %p15
    $region19: #{tpu_custom_call.1} parent=1 // pred_check_branch
      %143 = sbr.rel (%p141) target = $region21
    $region20: #{tpu_custom_call.1} parent=1 // pred_region
      %v144 = vld [vmem:[#allocation2] sm:$0xff]
      %v145 = vld [vmem:[#allocation2 + $0x8] sm:$0xff]
      %v146 = vld [vmem:[%s2] sm:$0x1]
      %v148 = vlaneseq
      %v149 = vshrl.u32 %v148, 7
      %v150 = vsub.s32 0, %v149
      %v151 = vrot.slane %v146, %v150
      %v153 = vadd.f32 %v144, %v151
      %v154 = vadd.f32 %v145, %v151
      %155 = vst.msk [vmem:[#allocation3] sm:$0xff] %vm138, %v153
      %156 = vst.msk [vmem:[#allocation3 + $0x8] sm:$0xff] %vm138, %v154
    $region21: #{tpu_custom_call.1} parent=1 // pred_fallthru
      _
    // Predicated region
    $region22: #{tpu_custom_call.1} parent=1 // pred_check
      _
    $region23: #{tpu_custom_call.1} parent=1 // pred_check_branch
      %158 = sbr.rel (0) target = $region25
    $region24: #{tpu_custom_call.1} parent=1 // pred_region
      %s160 = ssub.s32 256, 256
      %161 = vsyncadd [#allocation4], %s160
      %s162 = sshll.u32 [#allocation3], 4
      %s163 = int_to_ptr.vmem [resolvable:$true] %s162
      %168 = dma.vmem_to_hbm [thread:$0]  %s163, 256, %s3, [#allocation4], 128, 128, 8
    $region25: #{tpu_custom_call.1} parent=1 // pred_fallthru
      _
    // Predicated region
    $region26: #{tpu_custom_call.1} parent=1 // pred_check
      _
    $region27: #{tpu_custom_call.1} parent=1 // pred_check_branch
      %170 = sbr.rel (0) target = $region29
    $region28: #{tpu_custom_call.1} parent=1 // pred_region
      %171 = dma.done [#allocation4], 256
    $region29: #{tpu_custom_call.1} parent=1 // pred_fallthru
      _
    %172 = vsyncpa [#allocation4], 1

</llo_original>
